<compile_context>
chip_gen: v5e
topology: v5e:2x2
jax: 0.10.0
libtpu: 0.0.40
codegen_flags: <defaults>
</compile_context>

<pallas_src>
import math
import functools

import jax
import jax.numpy as jnp
from jax.experimental import pallas as pl
from jax.experimental.pallas import tpu as pltpu

BN_EPS = 1e-5
INV_SQRT2 = 1.0 / math.sqrt(2.0)


def dense_layer_kernel(x_ref, w_ref, b_ref, gamma_ref, beta_ref, o_ref, acc_ref,
                       *, n_valid):
    k = pl.program_id(1)

    # --- accumulate phase (every K step) ------------------------------------
    @pl.when(k == 0)
    def _init():
        # Seed accumulator with the broadcast bias (init write happens anyway).
        acc_ref[...] = jnp.broadcast_to(
            b_ref[...].astype(jnp.float32), acc_ref.shape)

    acc_ref[...] += jnp.dot(
        x_ref[...], w_ref[...], preferred_element_type=jnp.float32
    )

    # --- finalize phase (last K step): BN + dropout(id) + GELU --------------
    @pl.when(k == pl.num_programs(1) - 1)
    def _finalize():
        h = acc_ref[...]
        n_rows = h.shape[0]
        inv_n = jnp.float32(1.0 / n_valid)

        if n_rows == n_valid:
            # Fast path: no batch padding, plain reductions.
            mean = jnp.sum(h, axis=0, keepdims=True) * inv_n
            centered = h - mean
            var = jnp.sum(centered * centered, axis=0, keepdims=True) * inv_n
        else:
            # Batch was padded to a sublane multiple: mask out padded rows so
            # the BatchNorm statistics only see the valid batch.
            row_ids = jax.lax.broadcasted_iota(jnp.int32, (n_rows, 1), 0)
            valid = row_ids < n_valid
            zero = jnp.zeros_like(h)
            mean = jnp.sum(jnp.where(valid, h, zero), axis=0, keepdims=True) * inv_n
            centered = h - mean
            var = jnp.sum(jnp.where(valid, centered * centered, zero),
                          axis=0, keepdims=True) * inv_n

        # Biased batch variance (training-mode BatchNorm1d), eps = 1e-5.
        scale = gamma_ref[...] * jax.lax.rsqrt(var + BN_EPS)
        shift = beta_ref[...] - mean * scale
        hn = h * scale + shift

        # Dropout: identity (eval semantics).

        # GELU (exact, erf-based — matches nn.GELU() default).
        out = 0.5 * hn * (1.0 + jax.lax.erf(hn * INV_SQRT2))

        o_ref[...] = out.astype(o_ref.dtype)


@functools.partial(jax.jit, static_argnames=("tn", "tk"))
def dense_layer(x, w, b, gamma, beta, *, tn=256, tk=256):
    """x: (N, F_in) f32; w: (F_in, F_out); b/gamma/beta: (1, F_out) or (F_out,)."""
    n, f_in = x.shape
    f_out = w.shape[1]

    b = b.reshape(1, f_out)
    gamma = gamma.reshape(1, f_out)
    beta = beta.reshape(1, f_out)

    # Pad feature dims to tile multiples (lane-dense, MXU-native widths) and
    # the batch dim to a sublane multiple of 8.
    f_in_p = int(pl.cdiv(f_in, tk)) * tk
    f_out_p = int(pl.cdiv(f_out, tn)) * tn
    n_p = int(pl.cdiv(n, 8)) * 8
    pad_k = f_in_p - f_in
    pad_n = f_out_p - f_out
    pad_b = n_p - n

    x_p = jnp.pad(x, ((0, pad_b), (0, pad_k)))
    w_p = jnp.pad(w, ((0, pad_k), (0, pad_n)))
    b_p = jnp.pad(b, ((0, 0), (0, pad_n)))
    g_p = jnp.pad(gamma, ((0, 0), (0, pad_n)))
    be_p = jnp.pad(beta, ((0, 0), (0, pad_n)))

    grid = (f_out_p // tn, f_in_p // tk)

    # Double-buffered inputs/outputs + accumulator, plus headroom.
    vmem_bytes = 4 * (
        2 * n_p * tk        # x tile, 2 buffers
        + 2 * tk * tn       # w tile, 2 buffers
        + 6 * tn            # b/gamma/beta tiles, 2 buffers each
        + 2 * n_p * tn      # output tile, 2 buffers
        + n_p * tn          # accumulator scratch
    ) + (4 << 20)
    vmem_limit = max(min(vmem_bytes, 64 * 1024 * 1024), 16 * 1024 * 1024)

    kernel = functools.partial(dense_layer_kernel, n_valid=n)

    out_p = pl.pallas_call(
        kernel,
        out_shape=jax.ShapeDtypeStruct((n_p, f_out_p), jnp.float32),
        grid_spec=pltpu.PrefetchScalarGridSpec(
            num_scalar_prefetch=0,
            grid=grid,
            in_specs=[
                pl.BlockSpec((n_p, tk), lambda j, k: (0, k)),  # x
                pl.BlockSpec((tk, tn), lambda j, k: (k, j)),   # w
                pl.BlockSpec((1, tn), lambda j, k: (0, j)),    # b
                pl.BlockSpec((1, tn), lambda j, k: (0, j)),    # gamma
                pl.BlockSpec((1, tn), lambda j, k: (0, j)),    # beta
            ],
            out_specs=pl.BlockSpec((n_p, tn), lambda j, k: (0, j)),
            scratch_shapes=[pltpu.VMEM((n_p, tn), jnp.float32)],
        ),
        compiler_params=pltpu.CompilerParams(
            dimension_semantics=("parallel", "arbitrary"),
            vmem_limit_bytes=vmem_limit,
        ),
    )(x_p, w_p, b_p, g_p, be_p)

    return out_p[:n, :f_out]


def reference(x, w, b, gamma, beta):
    h = x @ w + b
    mean = jnp.mean(h, axis=0, keepdims=True)
    var = jnp.mean((h - mean) ** 2, axis=0, keepdims=True)
    h = (h - mean) / jnp.sqrt(var + BN_EPS)
    h = h * gamma + beta
    return 0.5 * h * (1.0 + jax.lax.erf(h / math.sqrt(2.0)))


if __name__ == "__main__":
    key = jax.random.PRNGKey(0)
    k_x, k_w, k_b, k_g, k_beta = jax.random.split(key, 5)

    batch = 8
    in_features = 32
    out_features = 64

    x = jax.random.normal(k_x, (batch, in_features), dtype=jnp.float32)

    # Deterministic synthetic parameters (shapes from nn.Linear / nn.BatchNorm1d).
    bound = 1.0 / math.sqrt(in_features)
    w = jax.random.uniform(
        k_w, (in_features, out_features), minval=-bound, maxval=bound,
        dtype=jnp.float32)
    b = jax.random.uniform(
        k_b, (1, out_features), minval=-bound, maxval=bound, dtype=jnp.float32)
    # BatchNorm affine params (default init is ones/zeros; perturb to exercise them).
    gamma = 1.0 + 0.1 * jax.random.normal(k_g, (1, out_features), dtype=jnp.float32)
    beta = 0.1 * jax.random.normal(k_beta, (1, out_features), dtype=jnp.float32)

    out = dense_layer(x, w, b, gamma, beta)
    jax.block_until_ready(out)

    ref = reference(x, w, b, gamma, beta)
    assert out.shape == (batch, out_features)
    assert jnp.allclose(out, ref, atol=1e-4, rtol=1e-4)

    print("KERNEL_OK")
</pallas_src>

<mosaic_0001>
module attributes {stable_mosaic.version = 11 : i64} {
  func.func @dense_layer_kernel(%arg0: i32, %arg1: i32, %arg2: memref<8x256xf32, #tpu.memory_space<vmem>>, %arg3: memref<256x256xf32, #tpu.memory_space<vmem>>, %arg4: memref<1x256xf32, #tpu.memory_space<vmem>>, %arg5: memref<1x256xf32, #tpu.memory_space<vmem>>, %arg6: memref<1x256xf32, #tpu.memory_space<vmem>>, %arg7: memref<8x256xf32, #tpu.memory_space<vmem>>, %arg8: memref<8x256xf32, #tpu.memory_space<vmem>>) attributes {dimension_semantics = [#tpu.dimension_semantics<parallel>, #tpu.dimension_semantics<arbitrary>], iteration_bounds = array<i64: 1, 1>, scalar_prefetch = 0 : i64, scratch_operands = 1 : i64, tpu.core_type = #tpu.core_type<tc>, window_params = [{transform_indices = @transform_0, window_bounds = array<i64: 8, 256>}, {transform_indices = @transform_1, window_bounds = array<i64: 256, 256>}, {transform_indices = @transform_2, window_bounds = array<i64: 1, 256>}, {transform_indices = @transform_3, window_bounds = array<i64: 1, 256>}, {transform_indices = @transform_4, window_bounds = array<i64: 1, 256>}, {transform_indices = @transform_5, window_bounds = array<i64: 8, 256>}]} {
    %c0_i32 = arith.constant 0 : i32
    %0 = arith.cmpi eq, %arg1, %c0_i32 : i32
    %1 = arith.extui %0 : i1 to i32
    %c0_i32_0 = arith.constant 0 : i32
    %2 = arith.cmpi ne, %1, %c0_i32_0 : i32
    scf.if %2 {
      %c0_10 = arith.constant 0 : index
      %c0_11 = arith.constant 0 : index
      %12 = vector.load %arg4[%c0_10, %c0_11] : memref<1x256xf32, #tpu.memory_space<vmem>>, vector<1x256xf32>
      %13 = vector.shape_cast %12 : vector<1x256xf32> to vector<1x256xf32>
      %14 = vector.broadcast %13 : vector<1x256xf32> to vector<8x256xf32>
      %c0_12 = arith.constant 0 : index
      %c0_13 = arith.constant 0 : index
      %15 = vector.load %arg8[%c0_12, %c0_13] : memref<8x256xf32, #tpu.memory_space<vmem>>, vector<8x256xf32>
      tpu.vector_store %arg8[%c0_12, %c0_13], %14 {strides = array<i32>} : memref<8x256xf32, #tpu.memory_space<vmem>>, vector<8x256xf32>,
    } else {
    }
    %c0 = arith.constant 0 : index
    %c0_1 = arith.constant 0 : index
    %3 = vector.load %arg8[%c0, %c0_1] : memref<8x256xf32, #tpu.memory_space<vmem>>, vector<8x256xf32>
    %c0_2 = arith.constant 0 : index
    %c0_3 = arith.constant 0 : index
    %4 = vector.load %arg2[%c0_2, %c0_3] : memref<8x256xf32, #tpu.memory_space<vmem>>, vector<8x256xf32>
    %c0_4 = arith.constant 0 : index
    %c0_5 = arith.constant 0 : index
    %5 = vector.load %arg3[%c0_4, %c0_5] : memref<256x256xf32, #tpu.memory_space<vmem>>, vector<256x256xf32>
    %cst = arith.constant dense<0.000000e+00> : vector<8x256xf32>
    %6 = tpu.matmul %4, %5, %cst {dimension_numbers = #tpu.dot_dimension_numbers<[1], [0], [0], [1], [0, 0, 1, 1], [], []>} : vector<8x256xf32>, vector<256x256xf32>, vector<8x256xf32> -> vector<8x256xf32>
    %7 = arith.addf %3, %6 : vector<8x256xf32>
    %c0_6 = arith.constant 0 : index
    %c0_7 = arith.constant 0 : index
    %8 = vector.load %arg8[%c0_6, %c0_7] : memref<8x256xf32, #tpu.memory_space<vmem>>, vector<8x256xf32>
    tpu.vector_store %arg8[%c0_6, %c0_7], %7 {strides = array<i32>} : memref<8x256xf32, #tpu.memory_space<vmem>>, vector<8x256xf32>,
    %c0_i32_8 = arith.constant 0 : i32
    %9 = arith.cmpi eq, %arg1, %c0_i32_8 : i32
    %10 = arith.extui %9 : i1 to i32
    %c0_i32_9 = arith.constant 0 : i32
    %11 = arith.cmpi ne, %10, %c0_i32_9 : i32
    scf.if %11 {
      %c0_10 = arith.constant 0 : index
      %c0_11 = arith.constant 0 : index
      %12 = vector.load %arg8[%c0_10, %c0_11] : memref<8x256xf32, #tpu.memory_space<vmem>>, vector<8x256xf32>
      %cst_12 = arith.constant dense<0.000000e+00> : vector<256xf32>
      %13 = vector.multi_reduction <add>, %12, %cst_12 [0] : vector<8x256xf32> to vector<256xf32>
      %14 = vector.shape_cast %13 : vector<256xf32> to vector<1x256xf32>
      %cst_13 = arith.constant 1.250000e-01 : f32
      %15 = vector.broadcast %cst_13 : f32 to vector<1x256xf32>
      %16 = arith.mulf %14, %15 : vector<1x256xf32>
      %17 = vector.broadcast %16 : vector<1x256xf32> to vector<8x256xf32>
      %18 = arith.subf %12, %17 : vector<8x256xf32>
      %19 = arith.mulf %18, %18 : vector<8x256xf32>
      %cst_14 = arith.constant dense<0.000000e+00> : vector<256xf32>
      %20 = vector.multi_reduction <add>, %19, %cst_14 [0] : vector<8x256xf32> to vector<256xf32>
      %21 = vector.shape_cast %20 : vector<256xf32> to vector<1x256xf32>
      %cst_15 = arith.constant 1.250000e-01 : f32
      %22 = vector.broadcast %cst_15 : f32 to vector<1x256xf32>
      %23 = arith.mulf %21, %22 : vector<1x256xf32>
      %c0_16 = arith.constant 0 : index
      %c0_17 = arith.constant 0 : index
      %24 = vector.load %arg5[%c0_16, %c0_17] : memref<1x256xf32, #tpu.memory_space<vmem>>, vector<1x256xf32>
      %cst_18 = arith.constant 9.99999974E-6 : f32
      %25 = vector.broadcast %cst_18 : f32 to vector<1x256xf32>
      %26 = arith.addf %23, %25 : vector<1x256xf32>
      %27 = math.rsqrt %26 : vector<1x256xf32>
      %28 = arith.mulf %24, %27 : vector<1x256xf32>
      %c0_19 = arith.constant 0 : index
      %c0_20 = arith.constant 0 : index
      %29 = vector.load %arg6[%c0_19, %c0_20] : memref<1x256xf32, #tpu.memory_space<vmem>>, vector<1x256xf32>
      %30 = arith.mulf %16, %28 : vector<1x256xf32>
      %31 = arith.subf %29, %30 : vector<1x256xf32>
      %32 = vector.broadcast %28 : vector<1x256xf32> to vector<8x256xf32>
      %33 = arith.mulf %12, %32 : vector<8x256xf32>
      %34 = vector.broadcast %31 : vector<1x256xf32> to vector<8x256xf32>
      %35 = arith.addf %33, %34 : vector<8x256xf32>
      %cst_21 = arith.constant 5.000000e-01 : f32
      %36 = vector.broadcast %cst_21 : f32 to vector<8x256xf32>
      %37 = arith.mulf %36, %35 : vector<8x256xf32>
      %cst_22 = arith.constant 0.707106769 : f32
      %38 = vector.broadcast %cst_22 : f32 to vector<8x256xf32>
      %39 = arith.mulf %35, %38 : vector<8x256xf32>
      %40 = math.erf %39 : vector<8x256xf32>
      %cst_23 = arith.constant 1.000000e+00 : f32
      %41 = vector.broadcast %cst_23 : f32 to vector<8x256xf32>
      %42 = arith.addf %41, %40 : vector<8x256xf32>
      %43 = arith.mulf %37, %42 : vector<8x256xf32>
      %c0_24 = arith.constant 0 : index
      %c0_25 = arith.constant 0 : index
      %44 = vector.load %arg7[%c0_24, %c0_25] : memref<8x256xf32, #tpu.memory_space<vmem>>, vector<8x256xf32>
      tpu.vector_store %arg7[%c0_24, %c0_25], %43 {strides = array<i32>} : memref<8x256xf32, #tpu.memory_space<vmem>>, vector<8x256xf32>,
    } else {
    }
    return
  }
  func.func @transform_0(%arg0: i32, %arg1: i32) -> (i32, i32) {
    %c0_i32 = arith.constant 0 : i32
    %c0_i32_0 = arith.constant 0 : i32
    return %c0_i32, %arg1 : i32, i32
  }
  func.func @transform_1(%arg0: i32, %arg1: i32) -> (i32, i32) {
    %c0_i32 = arith.constant 0 : i32
    return %arg1, %arg0 : i32, i32
  }
  func.func @transform_2(%arg0: i32, %arg1: i32) -> (i32, i32) {
    %c0_i32 = arith.constant 0 : i32
    %c0_i32_0 = arith.constant 0 : i32
    return %c0_i32, %arg0 : i32, i32
  }
  func.func @transform_3(%arg0: i32, %arg1: i32) -> (i32, i32) {
    %c0_i32 = arith.constant 0 : i32
    %c0_i32_0 = arith.constant 0 : i32
    return %c0_i32, %arg0 : i32, i32
  }
  func.func @transform_4(%arg0: i32, %arg1: i32) -> (i32, i32) {
    %c0_i32 = arith.constant 0 : i32
    %c0_i32_0 = arith.constant 0 : i32
    return %c0_i32, %arg0 : i32, i32
  }
  func.func @transform_5(%arg0: i32, %arg1: i32) -> (i32, i32) {
    %c0_i32 = arith.constant 0 : i32
    %c0_i32_0 = arith.constant 0 : i32
    return %c0_i32, %arg0 : i32, i32
  }
}

</mosaic_0001>

<llo_original>
// kernel: dense_layer.1
$region0: #{dense_layer.1}
  #allocation0 [shape = 'u32[]', space=smem, size = 0x4, offset = 0x4, fixed_abs, tag = 'smem constant byte address 0x4 - core index']
  #allocation1 [shape = 'u32[72,128]{1,0:T(1,128)}', space=vmem, size = 0x9000, scoped, tag = 'internal scratch']
  #allocation2 [shape = 'f32[8,256]{1,0:T(8,128)}', space=vmem, size = 0x2000, scoped, tag = 'scratch operand']
  %s0 = inlined_call_operand.vmem [shape: f32[8,256], index: 0, kind: input, shape index: {}]
  %s1 = inlined_call_operand.vmem [shape: f32[256,256], index: 1, kind: input, shape index: {}]
  %s2 = inlined_call_operand.vmem [shape: f32[1,256], index: 2, kind: input, shape index: {}]
  %s3 = inlined_call_operand.vmem [shape: f32[1,256], index: 3, kind: input, shape index: {}]
  %s4 = inlined_call_operand.vmem [shape: f32[1,256], index: 4, kind: input, shape index: {}]
  %s5 = inlined_call_operand.vmem [shape: f32[8,256], index: 5, kind: output, shape index: {}]
  %s6 = sld [smem:[#allocation0]]
  $region38: #{dense_layer.1} parent=0
    _
  %s8 = ssub.s32 1, %s6
  %s9 = scalar_select 0, %s8, %s6
  // Predicated region
  $region2: #{dense_layer.1} parent=0 // pred_check
    _
  $region3: #{dense_layer.1} parent=0 // pred_check_branch
    %11 = sbr.rel (0) target = $region5
  $region4: #{dense_layer.1} parent=0 // pred_region
    _
  $region5: #{dense_layer.1} parent=0 // pred_fallthru
    _
  // Predicated region
  $region6: #{dense_layer.1} parent=0 // pred_check
    _
  $region7: #{dense_layer.1} parent=0 // pred_check_branch
    %13 = sbr.rel (0) target = $region9
  $region8: #{dense_layer.1} parent=0 // pred_region
    _
  $region9: #{dense_layer.1} parent=0 // pred_fallthru
    _
  // Predicated region
  $region10: #{dense_layer.1} parent=0 // pred_check
    _
  $region11: #{dense_layer.1} parent=0 // pred_check_branch
    %15 = sbr.rel (0) target = $region13
  $region12: #{dense_layer.1} parent=0 // pred_region
    _
  $region13: #{dense_layer.1} parent=0 // pred_fallthru
    _
  // Predicated region
  $region14: #{dense_layer.1} parent=0 // pred_check
    _
  $region15: #{dense_layer.1} parent=0 // pred_check_branch
    %17 = sbr.rel (0) target = $region17
  $region16: #{dense_layer.1} parent=0 // pred_region
    _
  $region17: #{dense_layer.1} parent=0 // pred_fallthru
    _
  // Predicated region
  $region18: #{dense_layer.1} parent=0 // pred_check
    _
  $region19: #{dense_layer.1} parent=0 // pred_check_branch
    %19 = sbr.rel (0) target = $region21
  $region20: #{dense_layer.1} parent=0 // pred_region
    _
  $region21: #{dense_layer.1} parent=0 // pred_fallthru
    _
  %p20 = scmp.eq.s32.totalorder 0, 0
  // Predicated region
  $region22: #{dense_layer.1} parent=0 // pred_check
    %p21 = pneg %p20
  $region23: #{dense_layer.1} parent=0 // pred_check_branch
    %23 = sbr.rel (%p21) target = $region25
  $region24: #{dense_layer.1} parent=0 // pred_region
    %v24 = vld [vmem:[%s2] sm:$0x3]
    %v26 = vperm.slane %v24, 0
    %v27 = vperm.slane %v24, 1
    %30 = vst [vmem:[#allocation2] sm:$0xff] %v26
    %31 = vst [vmem:[#allocation2 + $0x8] sm:$0xff] %v27
  $region25: #{dense_layer.1} parent=0 // pred_fallthru
    _
  %v32 = vld [vmem:[#allocation2] sm:$0xff]
  %v33 = vld [vmem:[#allocation2 + $0x8] sm:$0xff]
  %v34 = vld [vmem:[%s0] sm:$0xff]
  %v35 = vld [vmem:[%s0 + $0x8] sm:$0xff]
  %v36 = vld [vmem:[%s1] sm:$0xff]
  %v37 = vld [vmem:[%s1 + $0x8] sm:$0xff]
  %v38 = vld [vmem:[%s1 + $0x10] sm:$0xff]
  %v39 = vld [vmem:[%s1 + $0x18] sm:$0xff]
  %v40 = vld [vmem:[%s1 + $0x20] sm:$0xff]
  %v41 = vld [vmem:[%s1 + $0x28] sm:$0xff]
  %v42 = vld [vmem:[%s1 + $0x30] sm:$0xff]
  %v43 = vld [vmem:[%s1 + $0x38] sm:$0xff]
  %v44 = vld [vmem:[%s1 + $0x40] sm:$0xff]
  %v45 = vld [vmem:[%s1 + $0x48] sm:$0xff]
  %v46 = vld [vmem:[%s1 + $0x50] sm:$0xff]
  %v47 = vld [vmem:[%s1 + $0x58] sm:$0xff]
  %v48 = vld [vmem:[%s1 + $0x60] sm:$0xff]
  %v49 = vld [vmem:[%s1 + $0x68] sm:$0xff]
  %v50 = vld [vmem:[%s1 + $0x70] sm:$0xff]
  %v51 = vld [vmem:[%s1 + $0x78] sm:$0xff]
  %v52 = vld [vmem:[%s1 + $0x80] sm:$0xff]
  %v53 = vld [vmem:[%s1 + $0x88] sm:$0xff]
  %v54 = vld [vmem:[%s1 + $0x90] sm:$0xff]
  %v55 = vld [vmem:[%s1 + $0x98] sm:$0xff]
  %v56 = vld [vmem:[%s1 + $0xa0] sm:$0xff]
  %v57 = vld [vmem:[%s1 + $0xa8] sm:$0xff]
  %v58 = vld [vmem:[%s1 + $0xb0] sm:$0xff]
  %v59 = vld [vmem:[%s1 + $0xb8] sm:$0xff]
  %v60 = vld [vmem:[%s1 + $0xc0] sm:$0xff]
  %v61 = vld [vmem:[%s1 + $0xc8] sm:$0xff]
  %v62 = vld [vmem:[%s1 + $0xd0] sm:$0xff]
  %v63 = vld [vmem:[%s1 + $0xd8] sm:$0xff]
  %v64 = vld [vmem:[%s1 + $0xe0] sm:$0xff]
  %v65 = vld [vmem:[%s1 + $0xe8] sm:$0xff]
  %v66 = vld [vmem:[%s1 + $0xf0] sm:$0xff]
  %v67 = vld [vmem:[%s1 + $0xf8] sm:$0xff]
  %v68 = vld [vmem:[%s1 + $0x100] sm:$0xff]
  %v69 = vld [vmem:[%s1 + $0x108] sm:$0xff]
  %v70 = vld [vmem:[%s1 + $0x110] sm:$0xff]
  %v71 = vld [vmem:[%s1 + $0x118] sm:$0xff]
  %v72 = vld [vmem:[%s1 + $0x120] sm:$0xff]
  %v73 = vld [vmem:[%s1 + $0x128] sm:$0xff]
  %v74 = vld [vmem:[%s1 + $0x130] sm:$0xff]
  %v75 = vld [vmem:[%s1 + $0x138] sm:$0xff]
  %v76 = vld [vmem:[%s1 + $0x140] sm:$0xff]
  %v77 = vld [vmem:[%s1 + $0x148] sm:$0xff]
  %v78 = vld [vmem:[%s1 + $0x150] sm:$0xff]
  %v79 = vld [vmem:[%s1 + $0x158] sm:$0xff]
  %v80 = vld [vmem:[%s1 + $0x160] sm:$0xff]
  %v81 = vld [vmem:[%s1 + $0x168] sm:$0xff]
  %v82 = vld [vmem:[%s1 + $0x170] sm:$0xff]
  %v83 = vld [vmem:[%s1 + $0x178] sm:$0xff]
  %v84 = vld [vmem:[%s1 + $0x180] sm:$0xff]
  %v85 = vld [vmem:[%s1 + $0x188] sm:$0xff]
  %v86 = vld [vmem:[%s1 + $0x190] sm:$0xff]
  %v87 = vld [vmem:[%s1 + $0x198] sm:$0xff]
  %v88 = vld [vmem:[%s1 + $0x1a0] sm:$0xff]
  %v89 = vld [vmem:[%s1 + $0x1a8] sm:$0xff]
  %v90 = vld [vmem:[%s1 + $0x1b0] sm:$0xff]
  %v91 = vld [vmem:[%s1 + $0x1b8] sm:$0xff]
  %v92 = vld [vmem:[%s1 + $0x1c0] sm:$0xff]
  %v93 = vld [vmem:[%s1 + $0x1c8] sm:$0xff]
  %v94 = vld [vmem:[%s1 + $0x1d0] sm:$0xff]
  %v95 = vld [vmem:[%s1 + $0x1d8] sm:$0xff]
  %v96 = vld [vmem:[%s1 + $0x1e0] sm:$0xff]
  %v97 = vld [vmem:[%s1 + $0x1e8] sm:$0xff]
  %v98 = vld [vmem:[%s1 + $0x1f0] sm:$0xff]
  %v99 = vld [vmem:[%s1 + $0x1f8] sm:$0xff]
  %100 = vmatpush.msra.mxu0 %v66
  %101 = vmatpush.msra.mxu0 %v64
  %102 = vmatpush.msra.mxu0 %v62
  %103 = vmatpush.msra.mxu0 %v60
  %104 = vmatpush.msra.mxu0 %v58
  %105 = vmatpush.msra.mxu0 %v56
  %106 = vmatpush.msra.mxu0 %v54
  %107 = vmatpush.msra.mxu0 %v52
  %108 = vmatpush.msra.mxu0 %v50
  %109 = vmatpush.msra.mxu0 %v48
  %110 = vmatpush.msra.mxu0 %v46
  %111 = vmatpush.msra.mxu0 %v44
  %112 = vmatpush.msra.mxu0 %v42
  %113 = vmatpush.msra.mxu0 %v40
  %114 = vmatpush.msra.mxu0 %v38
  %115 = vmatpush.msra.mxu0 %v36
  %116 = vmatmul.f32.gmra.mxu0 %v34
  %v117 = vpop.f32.mrf.mxu0
  %v118 = vadd.f32 0.0, %v117
  %119 = vdwg.mxu0
  %120 = vmatpush.msra.mxu0 %v98
  %121 = vmatpush.msra.mxu0 %v96
  %122 = vmatpush.msra.mxu0 %v94
  %123 = vmatpush.msra.mxu0 %v92
  %124 = vmatpush.msra.mxu0 %v90
  %125 = vmatpush.msra.mxu0 %v88
  %126 = vmatpush.msra.mxu0 %v86
  %127 = vmatpush.msra.mxu0 %v84
  %128 = vmatpush.msra.mxu0 %v82
  %129 = vmatpush.msra.mxu0 %v80
  %130 = vmatpush.msra.mxu0 %v78
  %131 = vmatpush.msra.mxu0 %v76
  %132 = vmatpush.msra.mxu0 %v74
  %133 = vmatpush.msra.mxu0 %v72
  %134 = vmatpush.msra.mxu0 %v70
  %135 = vmatpush.msra.mxu0 %v68
  %136 = vmatmul.f32.gmra.mxu0 %v35
  %v137 = vpop.f32.mrf.mxu0
  %v138 = vadd.f32 %v118, %v137
  %139 = vdwg.mxu0
  %140 = vmatpush.msra.mxu0 %v67
  %141 = vmatpush.msra.mxu0 %v65
  %142 = vmatpush.msra.mxu0 %v63
  %143 = vmatpush.msra.mxu0 %v61
  %144 = vmatpush.msra.mxu0 %v59
  %145 = vmatpush.msra.mxu0 %v57
  %146 = vmatpush.msra.mxu0 %v55
  %147 = vmatpush.msra.mxu0 %v53
  %148 = vmatpush.msra.mxu0 %v51
  %149 = vmatpush.msra.mxu0 %v49
  %150 = vmatpush.msra.mxu0 %v47
  %151 = vmatpush.msra.mxu0 %v45
  %152 = vmatpush.msra.mxu0 %v43
  %153 = vmatpush.msra.mxu0 %v41
  %154 = vmatpush.msra.mxu0 %v39
  %155 = vmatpush.msra.mxu0 %v37
  %156 = vmatmul.f32.gmra.mxu0 %v34
  %v157 = vpop.f32.mrf.mxu0
  %v158 = vadd.f32 0.0, %v157
  %159 = vdwg.mxu0
  %160 = vmatpush.msra.mxu0 %v99
  %161 = vmatpush.msra.mxu0 %v97
  %162 = vmatpush.msra.mxu0 %v95
  %163 = vmatpush.msra.mxu0 %v93
  %164 = vmatpush.msra.mxu0 %v91
  %165 = vmatpush.msra.mxu0 %v89
  %166 = vmatpush.msra.mxu0 %v87
  %167 = vmatpush.msra.mxu0 %v85
  %168 = vmatpush.msra.mxu0 %v83
  %169 = vmatpush.msra.mxu0 %v81
  %170 = vmatpush.msra.mxu0 %v79
  %171 = vmatpush.msra.mxu0 %v77
  %172 = vmatpush.msra.mxu0 %v75
  %173 = vmatpush.msra.mxu0 %v73
  %174 = vmatpush.msra.mxu0 %v71
  %175 = vmatpush.msra.mxu0 %v69
  %176 = vmatmul.f32.gmra.mxu0 %v35
  %v177 = vpop.f32.mrf.mxu0
  %v178 = vadd.f32 %v158, %v177
  %179 = vdwg.mxu0
  %v180 = vadd.f32 %v32, %v138
  %v181 = vadd.f32 %v33, %v178
  %182 = vst [vmem:[#allocation2] sm:$0xff] %v180
  %183 = vst [vmem:[#allocation2 + $0x8] sm:$0xff] %v181
  // Predicated region
  $region26: #{dense_layer.1} parent=0 // pred_check
    %p184 = pneg %p20
  $region27: #{dense_layer.1} parent=0 // pred_check_branch
    %186 = sbr.rel (%p184) target = $region29
  $region28: #{dense_layer.1} parent=0 // pred_region
    %v187 = vld [vmem:[#allocation2] sm:$0xff]
    %v188 = vld [vmem:[#allocation2 + $0x8] sm:$0xff]
    %v189 = vrot.slane %v187, 4
    %v190 = vadd.f32 %v187, %v189
    %v191 = vrot.slane %v190, 2
    %v192 = vadd.f32 %v190, %v191
    %v193 = vrot.slane %v192, 1
    %v194 = vadd.f32 %v192, %v193
    %v195 = vrot.slane %v188, 4
    %v196 = vadd.f32 %v188, %v195
    %v197 = vrot.slane %v196, 2
    %v198 = vadd.f32 %v196, %v197
    %v199 = vrot.slane %v198, 1
    %v200 = vadd.f32 %v198, %v199
    %v201 = vmul.f32 %v194, 0.125
    %v202 = vmul.f32 %v200, 0.125
    %v203 = vsub.f32 %v187, %v201
    %v204 = vsub.f32 %v188, %v202
    %v205 = vmul.f32 %v203, %v203
    %v206 = vmul.f32 %v204, %v204
    %v207 = vrot.slane %v205, 4
    %v208 = vadd.f32 %v205, %v207
    %v209 = vrot.slane %v208, 2
    %v210 = vadd.f32 %v208, %v209
    %v211 = vrot.slane %v210, 1
    %v212 = vadd.f32 %v210, %v211
    %v213 = vrot.slane %v206, 4
    %v214 = vadd.f32 %v206, %v213
    %v215 = vrot.slane %v214, 2
    %v216 = vadd.f32 %v214, %v215
    %v217 = vrot.slane %v216, 1
    %v218 = vadd.f32 %v216, %v217
    %v219 = vmul.f32 %v212, 0.125
    %v220 = vmul.f32 %v218, 0.125
    %v221 = vld [vmem:[%s3] sm:$0x3]
    %v222 = vadd.f32 %v219, 1e-05
    %v223 = vadd.f32 %v220, 1e-05
    %v224 = vrsqrt.pop %v222
    %v225 = vmul.f32 %v224, %v222
    %v226 = vmul.f32 %v225, %v224
    %v227 = vmul.f32 0.5, %v226
    %v228 = vsub.f32 1.5, %v227
    %v229 = vmul.f32 %v224, %v228
    %vm230 = vweird.f32 %v222
    %vm231 = vweird.f32 %v224
    %vm232 = vmor %vm230, %vm231
    %v233 = vsel %vm232, %v224, %v229
    %v234 = vrsqrt.pop %v223
    %v235 = vmul.f32 %v234, %v223
    %v236 = vmul.f32 %v235, %v234
    %v237 = vmul.f32 0.5, %v236
    %v238 = vsub.f32 1.5, %v237
    %v239 = vmul.f32 %v234, %v238
    %vm240 = vweird.f32 %v223
    %vm241 = vweird.f32 %v234
    %vm242 = vmor %vm240, %vm241
    %v243 = vsel %vm242, %v234, %v239
    %v246 = vrot.slane %v243, 7
    %vm247 = vcmask 1040384
    %v248 = vsel %vm247, %v233, %v246
    %v250 = vmul.f32 %v221, %v248
    %v251 = vld [vmem:[%s4] sm:$0x3]
    %v253 = vperm.slane %v250, 0
    %v254 = vperm.slane %v250, 1
    %v257 = vmul.f32 %v201, %v253
    %v258 = vmul.f32 %v202, %v254
    %v261 = vrot.slane %v258, 7
    %v262 = vsel %vm247, %v257, %v261
    %v264 = vsub.f32 %v251, %v262
    %v265 = vmul.f32 %v187, %v253
    %v266 = vmul.f32 %v188, %v254
    %v268 = vperm.slane %v264, 0
    %v269 = vperm.slane %v264, 1
    %v272 = vadd.f32 %v265, %v268
    %v273 = vadd.f32 %v266, %v269
    %v274 = vmul.f32 %v272, 0.5
    %v275 = vmul.f32 %v273, 0.5
    %v276 = vmul.f32 %v272, 0.70710677
    %v277 = vmul.f32 %v273, 0.70710677
    %v278 = vmul.f32 %v276, %v276
    %v279 = vmin.f32 16.0, %v278
    %v280 = vmul.f32 %v279, 2.1237322e-06
    %v281 = vadd.f32 %v280, 0.00028619796
    %v282 = vmul.f32 %v279, %v281
    %v283 = vadd.f32 %v282, 0.0036580483
    %v284 = vmul.f32 %v279, %v283
    %v285 = vadd.f32 %v284, 0.05243302
    %v286 = vmul.f32 %v279, %v285
    %v287 = vadd.f32 %v286, 0.18741608
    %v288 = vmul.f32 %v279, %v287
    %v289 = vadd.f32 %v288, 1.1283791
    %v290 = vmul.f32 %v276, %v289
    %v291 = vmul.f32 %v279, 3.8918573e-05
    %v292 = vadd.f32 %v291, 0.001143296
    %v293 = vmul.f32 %v279, %v292
    %v294 = vadd.f32 %v293, 0.014752088
    %v295 = vmul.f32 %v279, %v294
    %v296 = vadd.f32 %v295, 0.112945676
    %v297 = vmul.f32 %v279, %v296
    %v298 = vadd.f32 %v297, 0.4994258
    %v299 = vmul.f32 %v279, %v298
    %v300 = vadd.f32 %v299, 1.0
    %v301 = vrcp.pop %v300
    %v302 = vmul.f32 %v300, %v301
    %v303 = vsub.f32 1.0, %v302
    %v304 = vmul.f32 %v301, %v303
    %v305 = vadd.f32 %v301, %v304
    %vm306 = vweird.f32 %v300
    %vm307 = vweird.f32 %v301
    %vm308 = vmor %vm306, %vm307
    %v309 = vsel %vm308, %v301, %v305
    %v310 = vand.u32 2147483647, %v300
    %vm311 = vcmp.eq.f32.partialorder %v310, 8.507059e+37
    %v312 = vand.u32 %v300, 2147483648
    %v313 = vor.u32 1.1754944e-38, %v312
    %v314 = vsel %vm311, %v313, %v309
    %v315 = vmul.f32 %v290, %v314
    %v316 = vmin.f32 %v315, 1.0
    %v317 = vmax.f32 %v316, -1.0
    %v318 = vmul.f32 %v277, %v277
    %v319 = vmin.f32 16.0, %v318
    %v320 = vmul.f32 %v319, 2.1237322e-06
    %v321 = vadd.f32 %v320, 0.00028619796
    %v322 = vmul.f32 %v319, %v321
    %v323 = vadd.f32 %v322, 0.0036580483
    %v324 = vmul.f32 %v319, %v323
    %v325 = vadd.f32 %v324, 0.05243302
    %v326 = vmul.f32 %v319, %v325
    %v327 = vadd.f32 %v326, 0.18741608
    %v328 = vmul.f32 %v319, %v327
    %v329 = vadd.f32 %v328, 1.1283791
    %v330 = vmul.f32 %v277, %v329
    %v331 = vmul.f32 %v319, 3.8918573e-05
    %v332 = vadd.f32 %v331, 0.001143296
    %v333 = vmul.f32 %v319, %v332
    %v334 = vadd.f32 %v333, 0.014752088
    %v335 = vmul.f32 %v319, %v334
    %v336 = vadd.f32 %v335, 0.112945676
    %v337 = vmul.f32 %v319, %v336
    %v338 = vadd.f32 %v337, 0.4994258
    %v339 = vmul.f32 %v319, %v338
    %v340 = vadd.f32 %v339, 1.0
    %v341 = vrcp.pop %v340
    %v342 = vmul.f32 %v340, %v341
    %v343 = vsub.f32 1.0, %v342
    %v344 = vmul.f32 %v341, %v343
    %v345 = vadd.f32 %v341, %v344
    %vm346 = vweird.f32 %v340
    %vm347 = vweird.f32 %v341
    %vm348 = vmor %vm346, %vm347
    %v349 = vsel %vm348, %v341, %v345
    %v350 = vand.u32 2147483647, %v340
    %vm351 = vcmp.eq.f32.partialorder %v350, 8.507059e+37
    %v352 = vand.u32 %v340, 2147483648
    %v353 = vor.u32 1.1754944e-38, %v352
    %v354 = vsel %vm351, %v353, %v349
    %v355 = vmul.f32 %v330, %v354
    %v356 = vmin.f32 %v355, 1.0
    %v357 = vmax.f32 %v356, -1.0
    %v358 = vadd.f32 %v317, 1.0
    %v359 = vadd.f32 %v357, 1.0
    %v360 = vmul.f32 %v274, %v358
    %v361 = vmul.f32 %v275, %v359
    %362 = vst [vmem:[%s5] sm:$0xff] %v360
    %363 = vst [vmem:[%s5 + $0x8] sm:$0xff] %v361
  $region29: #{dense_layer.1} parent=0 // pred_fallthru
    _
  // Predicated region
  $region30: #{dense_layer.1} parent=0 // pred_check
    _
  $region31: #{dense_layer.1} parent=0 // pred_check_branch
    %365 = sbr.rel (0) target = $region33
  $region32: #{dense_layer.1} parent=0 // pred_region
    _
  $region33: #{dense_layer.1} parent=0 // pred_fallthru
    _
  // Predicated region
  $region34: #{dense_layer.1} parent=0 // pred_check
    _
  $region35: #{dense_layer.1} parent=0 // pred_check_branch
    %367 = sbr.rel (0) target = $region37
  $region36: #{dense_layer.1} parent=0 // pred_region
    _
  $region37: #{dense_layer.1} parent=0 // pred_fallthru
    _

</llo_original>
